<compile_context>
chip_gen: v5e
topology: v5e:2x2
jax: 0.10.0
libtpu: 0.0.40
codegen_flags: <defaults>
</compile_context>

<pallas_src>
import jax
import jax.numpy as jnp
from jax import lax
from jax.experimental import pallas as pl
from jax.experimental.pallas import tpu as pltpu


# ----------------------------- kernel -------------------------------------------------------


def se_scale_kernel(att_ref, x_ref, o_ref):
    # att: (tile_rows, 1)   x/o: (tile_rows, tile_hw) -- all already in feat_big's dtype.
    # Pure HBM-bound broadcast multiply; the per-row gate broadcasts across the lane dim.
    o_ref[...] = x_ref[...] * att_ref[...]


# ----------------------------- tiling helpers -----------------------------------------------


def _vmem_capacity_bytes(default_bytes=64 * 1024 * 1024):
    """Physical VMEM of the current TPU generation (conservative v7x-safe default)."""
    try:
        cap = getattr(pltpu.get_tpu_info(), "vmem_capacity_bytes", None)
        if cap:
            return int(cap)
    except Exception:
        pass
    return default_bytes


def _choose_tiles(rows, hw, itemsize, slab_budget, min_steps=2):
    """Pick (tile_rows, tile_hw) for the flattened (rows, hw) view.

    tile_rows is a multiple of the sublane packing (or the full rows extent); tile_hw is a
    multiple of 128 (or the full hw extent).  Ragged last blocks are left to a cdiv grid.
    Guarantees >= min_steps grid steps whenever the array is big enough to split, so v7x
    megacore sharding always has work for both TensorCores (no-op on single-TC v5e/v6e).
    """
    lane = 128
    sub = max(8, 32 // itemsize)                      # 8 for f32, 16 for bf16, 32 for int8
    max_elems = max(sub * lane, slab_budget // itemsize)

    # HW tile: keep the full (lane-dense) row if one packed row-group fits the slab,
    # otherwise the largest 128-multiple that does.
    if hw * sub <= max_elems:
        tile_hw = hw
    else:
        tile_hw = max(lane, (max_elems // sub) // lane * lane)

    # Row tile: as many packed row-groups as fit the slab.
    if rows <= sub:
        tile_rows = rows
    else:
        fit = max(1, max_elems // tile_hw)
        tile_rows = min(rows, max(8, (fit // sub) * sub))
        if tile_rows >= rows:
            tile_rows = rows

    def n_steps(tr, th):
        return pl.cdiv(rows, tr) * pl.cdiv(hw, th)

    # Never collapse to a single grid step (keeps both v7x TensorCores busy).
    if n_steps(tile_rows, tile_hw) < min_steps:
        half_hw = ((pl.cdiv(hw, lane) + 1) // 2) * lane
        if half_hw < hw:
            tile_hw = half_hw
    if n_steps(tile_rows, tile_hw) < min_steps:
        half_rows = ((pl.cdiv(rows, 8) + 1) // 2) * 8
        if half_rows < rows:
            tile_rows = half_rows
    # If still a single step the whole array is at most ~(8, 128) and cannot legally be split.
    return tile_rows, tile_hw


# ----------------------------- wrapper ------------------------------------------------------


def se_block(feat_small, feat_big, w1, w2, *, donate_feat_big=False):
    """SEBlock forward.
    feat_small: (N, C_in, Hs, Ws), feat_big: (N, C_out, Hb, Wb),
    w1: (C_out, C_in, 4, 4), w2: (C_out, C_out, 1, 1)."""
    N, C_in, Hs, Ws = feat_small.shape
    Nb, C_out, Hb, Wb = feat_big.shape
    assert N == Nb
    # TODO(synk): only the divisible case of AdaptiveAvgPool2d(4); ragged bins not handled.
    assert Hs % 4 == 0 and Ws % 4 == 0

    # ---- attention vector: tiny math, left to XLA (launch overhead > FLOPs) ----------------
    pooled = (
        feat_small.astype(jnp.float32)
        .reshape(N, C_in, 4, Hs // 4, 4, Ws // 4)
        .mean(axis=(3, 5))                               # AdaptiveAvgPool2d(4), divisible case
        .reshape(N, C_in * 16)                           # row-major (ci, kh, kw) flatten
    )
    w1m = w1.reshape(C_out, C_in * 16).astype(jnp.float32)
    w2m = w2.reshape(C_out, C_out).astype(jnp.float32)
    # Conv2d(ch_in, ch_out, 4, 1, 0, bias=False) on the pooled 4x4 map == matmul.
    h = jnp.dot(pooled, w1m.T, precision=lax.Precision.HIGHEST)
    h = h * jax.nn.sigmoid(h)                            # Swish
    # Conv2d(ch_out, ch_out, 1, 1, 0, bias=False) == matmul, then Sigmoid.
    att = jax.nn.sigmoid(jnp.dot(h, w2m.T, precision=lax.Precision.HIGHEST))
    # NOTE: casting the gate (not the product) to feat_big's dtype adds one rounding for
    # bf16 feat_big; acceptable for an SE gate and keeps the multiply in native dtype.
    att = att.astype(feat_big.dtype)                     # cast once, outside the kernel

    # ---- memory-bound broadcast gate: the Pallas kernel -------------------------------------
    HW = Hb * Wb
    R = N * C_out
    xb = feat_big.reshape(R, HW)                         # 2-D view: no sublane padding
    att2 = att.reshape(R, 1)

    itemsize = jnp.dtype(feat_big.dtype).itemsize
    vmem_cap = _vmem_capacity_bytes()
    # Pipelined VMEM ~= 4 x slab (double-buffered in + out; att is negligible); keep that
    # comfortably under physical VMEM on every generation (v7x: 64 MiB is the binding one).
    slab_budget = max(1 << 20, min(8 * 1024 * 1024, vmem_cap // 10))
    tile_rows, tile_hw = _choose_tiles(R, HW, itemsize, slab_budget)
    grid = (pl.cdiv(R, tile_rows), pl.cdiv(HW, tile_hw))

    out = pl.pallas_call(
        se_scale_kernel,
        out_shape=jax.ShapeDtypeStruct((R, HW), feat_big.dtype),
        grid=grid,
        in_specs=[
            pl.BlockSpec((tile_rows, 1), lambda r, t: (r, 0)),
            pl.BlockSpec((tile_rows, tile_hw), lambda r, t: (r, t)),
        ],
        out_specs=pl.BlockSpec((tile_rows, tile_hw), lambda r, t: (r, t)),
        compiler_params=pltpu.CompilerParams(
            dimension_semantics=("parallel", "parallel"),
            # Explicit headroom: v5e's 16 MiB default scoped limit would otherwise cap the
            # 4x-slab pipeline; stay <= ~3/4 of physical so v7x (64 MiB) keeps double-buffering.
            vmem_limit_bytes=int(min(vmem_cap * 3 // 4, 64 * 1024 * 1024)),
        ),
        input_output_aliases={1: 0} if donate_feat_big else {},
    )(att2, xb)
    return out.reshape(N, C_out, Hb, Wb)


# ----------------------------- reference & test ---------------------------------------------


def _spectral_normalize(w):
    # Exact spectral norm of the PyTorch-style flattened weight (C_out, -1); stands in for
    # spectral_norm's (converged) power iteration.
    mat = w.reshape(w.shape[0], -1)
    sigma = jnp.linalg.svd(mat, compute_uv=False)[0]
    return w / sigma


def _reference(feat_small, feat_big, w1, w2):
    N, C_in, Hs, Ws = feat_small.shape
    pooled = feat_small.reshape(N, C_in, 4, Hs // 4, 4, Ws // 4).mean(axis=(3, 5))
    h = jnp.einsum("nikl,oikl->no", pooled, w1, precision=lax.Precision.HIGHEST)
    h = h * jax.nn.sigmoid(h)
    s = jax.nn.sigmoid(
        jnp.einsum("no,po->np", h, w2[:, :, 0, 0], precision=lax.Precision.HIGHEST)
    )
    return feat_big * s[:, :, None, None]


if __name__ == "__main__":
    key = jax.random.PRNGKey(0)
    k_fs, k_fb, k_w1, k_w2 = jax.random.split(key, 4)

    N, C_in, C_out = 2, 4, 8
    Hs = Ws = 16          # feat_small spatial
    Hb = Wb = 32          # feat_big spatial

    feat_small = jax.random.normal(k_fs, (N, C_in, Hs, Ws), jnp.float32)
    feat_big = jax.random.normal(k_fb, (N, C_out, Hb, Wb), jnp.float32)

    # Deterministic Conv2d-style init (uniform in +/- 1/sqrt(fan_in)), then spectral norm.
    bound1 = 1.0 / jnp.sqrt(jnp.float32(C_in * 4 * 4))
    w1 = jax.random.uniform(k_w1, (C_out, C_in, 4, 4), jnp.float32, -bound1, bound1)
    bound2 = 1.0 / jnp.sqrt(jnp.float32(C_out))
    w2 = jax.random.uniform(k_w2, (C_out, C_out, 1, 1), jnp.float32, -bound2, bound2)
    w1 = _spectral_normalize(w1)
    w2 = _spectral_normalize(w2)

    out = jax.jit(se_block)(feat_small, feat_big, w1, w2)
    out = jax.block_until_ready(out)

    ref = _reference(feat_small, feat_big, w1, w2)
    assert out.shape == (N, C_out, Hb, Wb)
    assert jnp.allclose(out, ref, atol=1e-5, rtol=1e-5), "mismatch vs pure-JAX reference"

    print("KERNEL_OK")
</pallas_src>

<mosaic_0001>
module attributes {stable_mosaic.version = 11 : i64} {
  func.func @se_scale_kernel(%arg0: i32, %arg1: i32, %arg2: memref<16x1xf32, #tpu.memory_space<vmem>>, %arg3: memref<16x512xf32, #tpu.memory_space<vmem>>, %arg4: memref<16x512xf32, #tpu.memory_space<vmem>>) attributes {dimension_semantics = [#tpu.dimension_semantics<parallel>, #tpu.dimension_semantics<parallel>], iteration_bounds = array<i64: 1, 2>, scalar_prefetch = 0 : i64, scratch_operands = 0 : i64, tpu.core_type = #tpu.core_type<tc>, window_params = [{transform_indices = @transform_0, window_bounds = array<i64: 16, 1>}, {transform_indices = @transform_1, window_bounds = array<i64: 16, 512>}, {transform_indices = @transform_2, window_bounds = array<i64: 16, 512>}]} {
    %c0 = arith.constant 0 : index
    %c0_0 = arith.constant 0 : index
    %0 = vector.load %arg3[%c0, %c0_0] : memref<16x512xf32, #tpu.memory_space<vmem>>, vector<16x512xf32>
    %c0_1 = arith.constant 0 : index
    %c0_2 = arith.constant 0 : index
    %1 = vector.load %arg2[%c0_1, %c0_2] : memref<16x1xf32, #tpu.memory_space<vmem>>, vector<16x1xf32>
    %2 = vector.broadcast %1 : vector<16x1xf32> to vector<16x512xf32>
    %3 = arith.mulf %0, %2 : vector<16x512xf32>
    %c0_3 = arith.constant 0 : index
    %c0_4 = arith.constant 0 : index
    %4 = vector.load %arg4[%c0_3, %c0_4] : memref<16x512xf32, #tpu.memory_space<vmem>>, vector<16x512xf32>
    tpu.vector_store %arg4[%c0_3, %c0_4], %3 {strides = array<i32>} : memref<16x512xf32, #tpu.memory_space<vmem>>, vector<16x512xf32>,
    return
  }
  func.func @transform_0(%arg0: i32, %arg1: i32) -> (i32, i32) {
    %c0_i32 = arith.constant 0 : i32
    %c0_i32_0 = arith.constant 0 : i32
    return %arg0, %c0_i32 : i32, i32
  }
  func.func @transform_1(%arg0: i32, %arg1: i32) -> (i32, i32) {
    %c0_i32 = arith.constant 0 : i32
    return %arg0, %arg1 : i32, i32
  }
  func.func @transform_2(%arg0: i32, %arg1: i32) -> (i32, i32) {
    %c0_i32 = arith.constant 0 : i32
    return %arg0, %arg1 : i32, i32
  }
}

</mosaic_0001>

<llo_original>
// kernel: se_block.1
$region0: #{se_block.1}
  #allocation0 [shape = 'u32[]', space=smem, size = 0x4, offset = 0x4, fixed_abs, tag = 'smem constant byte address 0x4 - core index']
  #allocation1 [shape = 'u32[72,128]{1,0:T(1,128)}', space=vmem, size = 0x9000, scoped, tag = 'internal scratch']
  %s0 = inlined_call_operand.vmem [shape: f32[16,1], index: 0, kind: input, shape index: {}]
  %s1 = inlined_call_operand.vmem [shape: f32[16,1024], index: 1, kind: input, shape index: {}]
  %s2 = inlined_call_operand.vmem [shape: f32[16,1024], index: 2, kind: output, shape index: {}]
  %s3 = sld [smem:[#allocation0]]
  $region83: #{se_block.1} parent=0
    _
  %s5 = ssub.s32 1, %s3
  %s6 = scalar_select 0, %s5, %s3
  $region1: #{se_block.1} parent=0
    #allocation2 [shape = 'u8[65536]{0}', space=vmem, size = 0x10000, scoped, tag = 'input window, operand 1']
    #allocation3 [shape = 'u8[65536]{0}', space=vmem, size = 0x10000, scoped, tag = 'output window, operand 0']
    loop: start=0, step=1, limit=4
    $region2: #{se_block.1} parent=1 // loop_pre_header
      _
    $region3: #{se_block.1} parent=1 // loop_header
      %s8 = sphi 0, %s12
      %p9 = scmp.ge.s32.totalorder %s8, 4
      %s15 = sphi 0, %s27
      %s16 = sphi 0, %s23
      %s17 = sphi 0, %s15
      %s18 = sphi 0, %s16
      %s19 = sphi 0, %s17
      %s20 = sphi 0, %s18
      %s30 = sphi 0, %s32
      %s33 = sphi 0, %s30
      %s34 = sphi 0, %s33
      %s50 = sphi 0, %s34
      %s58 = sphi 0, %s60
      %s61 = sphi 0, %s58
      %s62 = sphi 0, %s61
      %s78 = sphi 0, %s62
      %s86 = sphi 0, %s88
      %s89 = sphi 0, %s86
      %s90 = sphi 0, %s89
      %s106 = sphi 0, %s90
    $region4: #{se_block.1} parent=1 // loop_header_branch
      %11 = sbr.rel (%p9) target = $region8
    $region5: #{se_block.1} parent=1 // loop_body
      %s13 = ssub.s32 %s8, 1
      %s14 = ssub.s32 %s8, 2
      %s21 = sadd.s32 1, %s16
      %p22 = scmp.ge.s32.totalorder %s21, 2
      %s23 = scalar_select %p22, 0, %s21
      %s24 = sadd.s32 1, %s15
      %s25 = scalar_select %p22, %s24, %s15
      %p26 = scmp.ge.s32.totalorder %s25, 1
      %s27 = scalar_select %p26, 0, %s25
      %s28 = ssub.s32 %s15, %s27
      %p29 = scmp.eq.s32.totalorder %s28, 0
      %s31 = sadd.s32 %s30, 1
      %s32 = scalar_select %p29, %s30, %s31
      %p35 = pneg %p29
      %p36 = scmp.eq.s32.totalorder %s8, 1
      %p37 = por %p35, %p36
      %p38 = scmp.ne.s32.totalorder %s30, %s33
      %p39 = scmp.eq.s32.totalorder %s8, 0
      %p40 = por %p38, %p39
      %p41 = scmp.ne.s32.totalorder %s30, %s33
      %p42 = scmp.eq.s32.totalorder %s13, 1
      %p43 = por %p41, %p42
      %p44 = scmp.ne.s32.totalorder %s33, %s34
      %p45 = scmp.eq.s32.totalorder %s13, 0
      %p46 = por %p44, %p45
      %p47 = scmp.ne.s32.totalorder %s33, %s34
      %p48 = scmp.eq.s32.totalorder %s14, 1
      %p49 = por %p47, %p48
      %p51 = scmp.ne.s32.totalorder %s34, %s50
      %p52 = scmp.eq.s32.totalorder %s14, 0
      %p53 = por %p51, %p52
      %s54 = ssub.s32 %s15, %s27
      %s55 = ssub.s32 %s16, %s23
      %s56 = sor.u32 %s54, %s55
      %p57 = scmp.eq.s32.totalorder %s56, 0
      %s59 = sadd.s32 %s58, 1
      %s60 = scalar_select %p57, %s58, %s59
      %p63 = pneg %p57
      %p64 = scmp.eq.s32.totalorder %s8, 1
      %p65 = por %p63, %p64
      %p66 = scmp.ne.s32.totalorder %s58, %s61
      %p67 = scmp.eq.s32.totalorder %s8, 0
      %p68 = por %p66, %p67
      %p69 = scmp.ne.s32.totalorder %s58, %s61
      %p70 = scmp.eq.s32.totalorder %s13, 1
      %p71 = por %p69, %p70
      %p72 = scmp.ne.s32.totalorder %s61, %s62
      %p73 = scmp.eq.s32.totalorder %s13, 0
      %p74 = por %p72, %p73
      %p75 = scmp.ne.s32.totalorder %s61, %s62
      %p76 = scmp.eq.s32.totalorder %s14, 1
      %p77 = por %p75, %p76
      %p79 = scmp.ne.s32.totalorder %s62, %s78
      %p80 = scmp.eq.s32.totalorder %s14, 0
      %p81 = por %p79, %p80
      %s82 = ssub.s32 %s15, %s27
      %s83 = ssub.s32 %s16, %s23
      %s84 = sor.u32 %s82, %s83
      %p85 = scmp.eq.s32.totalorder %s84, 0
      %s87 = sadd.s32 %s86, 1
      %s88 = scalar_select %p85, %s86, %s87
      %p91 = pneg %p85
      %p92 = scmp.eq.s32.totalorder %s8, 1
      %p93 = por %p91, %p92
      %p94 = scmp.ne.s32.totalorder %s86, %s89
      %p95 = scmp.eq.s32.totalorder %s8, 0
      %p96 = por %p94, %p95
      %p97 = scmp.ne.s32.totalorder %s86, %s89
      %p98 = scmp.eq.s32.totalorder %s13, 1
      %p99 = por %p97, %p98
      %p100 = scmp.ne.s32.totalorder %s89, %s90
      %p101 = scmp.eq.s32.totalorder %s13, 0
      %p102 = por %p100, %p101
      %p103 = scmp.ne.s32.totalorder %s89, %s90
      %p104 = scmp.eq.s32.totalorder %s14, 1
      %p105 = por %p103, %p104
      %p107 = scmp.ne.s32.totalorder %s90, %s106
      %p108 = scmp.eq.s32.totalorder %s14, 0
      %p109 = por %p107, %p108
      %p110 = scmp.le.s32.totalorder 1, %s8
      %p111 = scmp.lt.s32.totalorder %s8, 3
      %p112 = pnand %p110, %p111
      %p113 = pneg %p112
      // Predicated region
      $region9: #{se_block.1} parent=5 // pred_check
        _
      $region10: #{se_block.1} parent=5 // pred_check_branch
        %115 = sbr.rel (%p112) target = $region12
      $region11: #{se_block.1} parent=5 // pred_region
        %s116 = ssub.s32 %s8, 1
        // Predicated region
        $region13: #{se_block.1} parent=11 // pred_check
          %p117 = pneg %p46
        $region14: #{se_block.1} parent=11 // pred_check_branch
          %119 = sbr.rel (%p117) target = $region16
        $region15: #{se_block.1} parent=11 // pred_region
          %s120 = smul.u32 2, %s17
          %p121 = scmp.lt.s32.totalorder %s120, 1
          %s122 = scalar_select %p121, %s120, 1
          %s123 = smul.addr %s122, 8
          %s124 = scalar_lea.vmem %s0, %s123
          %s125 = smul.u32 2, %s17
        $region16: #{se_block.1} parent=11 // pred_fallthru
          _
      $region12: #{se_block.1} parent=5 // pred_fallthru
        _
      %p126 = scmp.lt.s32.totalorder %s8, 2
      // Predicated region
      $region17: #{se_block.1} parent=5 // pred_check
        %p127 = pneg %p126
      $region18: #{se_block.1} parent=5 // pred_check_branch
        %129 = sbr.rel (%p127) target = $region20
      $region19: #{se_block.1} parent=5 // pred_region
        // Predicated region
        $region21: #{se_block.1} parent=19 // pred_check
          %p130 = pneg %p68
        $region22: #{se_block.1} parent=19 // pred_check_branch
          %132 = sbr.rel (%p130) target = $region24
        $region23: #{se_block.1} parent=19 // pred_region
          %s133 = sand.u32 %s58, 1
          %s134 = sand.u32 %s58, 1
          %s135 = smul.addr %s134, 64
          %s136 = scalar_lea.vmem [#allocation2], %s135
          %s137 = smul.u32 2, %s15
          %s138 = smul.u32 4, %s16
          %s139 = smul.addr %s137, 8
          %s140 = sadd.s32 %s138, %s139
          %s141 = smul.addr %s140, 8
          %s142 = scalar_lea.vmem %s1, %s141
          // Predicated region
          $region25: #{se_block.1} parent=23 // pred_check
            _
          $region26: #{se_block.1} parent=23 // pred_check_branch
            %144 = sbr.rel (0) target = $region28
          $region27: #{se_block.1} parent=23 // pred_region
            // Predicated region
            $region29: #{se_block.1} parent=27 // pred_check
              _
            $region30: #{se_block.1} parent=27 // pred_check_branch
              %146 = sbr.rel (0) target = $region32
            $region31: #{se_block.1} parent=27 // pred_region
              loop: start=0, step=1, limit=1
              $region33: #{se_block.1} parent=31 // loop_pre_header
                _
              $region34: #{se_block.1} parent=31 // loop_header
                %s148 = sphi 0, %s152
                %p149 = scmp.ge.s32.totalorder %s148, 1
                %s153 = sphi %s142, %s142
                %s154 = sphi %s136, %s136
              $region35: #{se_block.1} parent=31 // loop_header_branch
                %151 = sbr.rel (%p149) target = $region39
              $region36: #{se_block.1} parent=31 // loop_body
                %v155 = vld [vmem:[%s153] sm:$0xff]
                %156 = vst [vmem:[%s154] sm:$0xff] %v155
                %v157 = vld [vmem:[%s153 + $0x8] sm:$0xff]
                %158 = vst [vmem:[%s154 + $0x8] sm:$0xff] %v157
                %v159 = vld [vmem:[%s153 + $0x10] sm:$0xff]
                %160 = vst [vmem:[%s154 + $0x10] sm:$0xff] %v159
                %v161 = vld [vmem:[%s153 + $0x18] sm:$0xff]
                %162 = vst [vmem:[%s154 + $0x18] sm:$0xff] %v161
                %v163 = vld [vmem:[%s153 + $0x40] sm:$0xff]
                %164 = vst [vmem:[%s154 + $0x20] sm:$0xff] %v163
                %v165 = vld [vmem:[%s153 + $0x48] sm:$0xff]
                %166 = vst [vmem:[%s154 + $0x28] sm:$0xff] %v165
                %v167 = vld [vmem:[%s153 + $0x50] sm:$0xff]
                %168 = vst [vmem:[%s154 + $0x30] sm:$0xff] %v167
                %v169 = vld [vmem:[%s153 + $0x58] sm:$0xff]
                %170 = vst [vmem:[%s154 + $0x38] sm:$0xff] %v169
              $region37: #{se_block.1} parent=31 // loop_footer
                %s152 = sadd.s32 1, %s148
              $region38: #{se_block.1} parent=31 // loop_footer_branch
                %147 = sbr.rel target = $region34
              $region39: #{se_block.1} parent=31 // loop_exit
                _
            $region32: #{se_block.1} parent=27 // pred_fallthru
              _
            // Predicated region
            $region40: #{se_block.1} parent=27 // pred_check
              _
            $region41: #{se_block.1} parent=27 // pred_check_branch
              %172 = sbr.rel target = $region43
            $region42: #{se_block.1} parent=27 // pred_region
              _
            $region43: #{se_block.1} parent=27 // pred_fallthru
              _
          $region28: #{se_block.1} parent=23 // pred_fallthru
            _
          %173 = vnop
        $region24: #{se_block.1} parent=19 // pred_fallthru
          _
      $region20: #{se_block.1} parent=5 // pred_fallthru
        _
      %p174 = scmp.le.s32.totalorder 1, %s8
      %p175 = scmp.lt.s32.totalorder %s8, 3
      %p176 = pnand %p174, %p175
      %p177 = pneg %p176
      // Predicated region
      $region44: #{se_block.1} parent=5 // pred_check
        _
      $region45: #{se_block.1} parent=5 // pred_check_branch
        %179 = sbr.rel (%p176) target = $region47
      $region46: #{se_block.1} parent=5 // pred_region
        %s180 = ssub.s32 %s8, 1
        %s181 = sand.u32 %s61, 1
        %s182 = sand.u32 %s61, 1
        %s183 = smul.addr %s182, 64
        %s184 = scalar_lea.vmem [#allocation2], %s183
        // Predicated region
        $region48: #{se_block.1} parent=46 // pred_check
          %p185 = pneg %p74
        $region49: #{se_block.1} parent=46 // pred_check_branch
          %187 = sbr.rel (%p185) target = $region51
        $region50: #{se_block.1} parent=46 // pred_region
          _
        $region51: #{se_block.1} parent=46 // pred_fallthru
          _
        %s188 = smul.u32 2, %s17
        %p189 = scmp.lt.s32.totalorder %s188, 1
        %s190 = scalar_select %p189, %s188, 1
        %s191 = smul.addr %s190, 8
        %s192 = scalar_lea.vmem %s0, %s191
        %p193 = pneg %p46
        %p194 = pneg %p43
        %s195 = sand.u32 %s61, 1
        %s196 = sand.u32 %s61, 1
        %s197 = smul.addr %s196, 64
        %s198 = scalar_lea.vmem [#allocation2], %s197
        %p199 = pneg %p74
        %p200 = pneg %p71
        %p201 = pneg %p102
        %p202 = pneg %p99
        %s203 = sand.u32 %s89, 1
        %s204 = sand.u32 %s89, 1
        %s205 = smul.addr %s204, 64
        %s206 = scalar_lea.vmem [#allocation3], %s205
        %s207 = smul.u32 2, %s17
        %p208 = scmp.lt.s32.totalorder %s207, 1
        %s209 = scalar_select %p208, %s207, 1
        %s210 = smul.addr %s209, 8
        %s211 = scalar_lea.vmem %s0, %s210
        %s212 = smul.u32 2, %s17
        %s213 = smul.u32 2, %s17
        %s214 = smul.u32 4, %s18
        %s215 = smul.u32 2, %s17
        %s216 = smul.u32 4, %s18
        %v217 = vld [vmem:[%s184] sm:$0xff]
        %v218 = vld [vmem:[%s184 + $0x8] sm:$0xff]
        %v219 = vld [vmem:[%s184 + $0x10] sm:$0xff]
        %v220 = vld [vmem:[%s184 + $0x18] sm:$0xff]
        %v221 = vld [vmem:[%s184 + $0x20] sm:$0xff]
        %v222 = vld [vmem:[%s184 + $0x28] sm:$0xff]
        %v223 = vld [vmem:[%s184 + $0x30] sm:$0xff]
        %v224 = vld [vmem:[%s184 + $0x38] sm:$0xff]
        %v225 = vld [vmem:[%s211] sm:$0xff]
        %v226 = vld [vmem:[%s211 + $0x8] sm:$0xff]
        %228 = vset.pattern.permute.xlu0 0
        %229 = vperm.xlu0 %228, %v225
        %v230 = vpop.permute.xlu0 %229
        %233 = vset.pattern.permute.xlu0 0
        %234 = vperm.xlu0 %233, %v226
        %v235 = vpop.permute.xlu0 %234
        %v237 = vmul.f32 %v217, %v230
        %v238 = vmul.f32 %v218, %v230
        %v239 = vmul.f32 %v219, %v230
        %v240 = vmul.f32 %v220, %v230
        %v241 = vmul.f32 %v221, %v235
        %v242 = vmul.f32 %v222, %v235
        %v243 = vmul.f32 %v223, %v235
        %v244 = vmul.f32 %v224, %v235
        %245 = vst [vmem:[%s206] sm:$0xff] %v237
        %246 = vst [vmem:[%s206 + $0x8] sm:$0xff] %v238
        %247 = vst [vmem:[%s206 + $0x10] sm:$0xff] %v239
        %248 = vst [vmem:[%s206 + $0x18] sm:$0xff] %v240
        %249 = vst [vmem:[%s206 + $0x20] sm:$0xff] %v241
        %250 = vst [vmem:[%s206 + $0x28] sm:$0xff] %v242
        %251 = vst [vmem:[%s206 + $0x30] sm:$0xff] %v243
        %252 = vst [vmem:[%s206 + $0x38] sm:$0xff] %v244
        %s253 = sand.u32 %s89, 1
        %s254 = sand.u32 %s89, 1
        %s255 = smul.addr %s254, 64
        %s256 = scalar_lea.vmem [#allocation3], %s255
        // Predicated region
        $region52: #{se_block.1} parent=46 // pred_check
          %p257 = pneg %p99
        $region53: #{se_block.1} parent=46 // pred_check_branch
          %259 = sbr.rel (%p257) target = $region55
        $region54: #{se_block.1} parent=46 // pred_region
          %s260 = smul.u32 2, %s17
          %s261 = smul.u32 4, %s18
          %s262 = smul.addr %s260, 8
          %s263 = sadd.s32 %s261, %s262
          %s264 = smul.addr %s263, 8
          %s265 = scalar_lea.vmem %s2, %s264
          // Predicated region
          $region56: #{se_block.1} parent=54 // pred_check
            _
          $region57: #{se_block.1} parent=54 // pred_check_branch
            %267 = sbr.rel (0) target = $region59
          $region58: #{se_block.1} parent=54 // pred_region
            // Predicated region
            $region60: #{se_block.1} parent=58 // pred_check
              _
            $region61: #{se_block.1} parent=58 // pred_check_branch
              %269 = sbr.rel (0) target = $region63
            $region62: #{se_block.1} parent=58 // pred_region
              loop: start=0, step=1, limit=1
              $region64: #{se_block.1} parent=62 // loop_pre_header
                _
              $region65: #{se_block.1} parent=62 // loop_header
                %s271 = sphi 0, %s275
                %p272 = scmp.ge.s32.totalorder %s271, 1
                %s276 = sphi %s256, %s256
                %s277 = sphi %s265, %s265
              $region66: #{se_block.1} parent=62 // loop_header_branch
                %274 = sbr.rel (%p272) target = $region70
              $region67: #{se_block.1} parent=62 // loop_body
                %v278 = vld [vmem:[%s276] sm:$0xff]
                %279 = vst [vmem:[%s277] sm:$0xff] %v278
                %v280 = vld [vmem:[%s276 + $0x8] sm:$0xff]
                %281 = vst [vmem:[%s277 + $0x8] sm:$0xff] %v280
                %v282 = vld [vmem:[%s276 + $0x10] sm:$0xff]
                %283 = vst [vmem:[%s277 + $0x10] sm:$0xff] %v282
                %v284 = vld [vmem:[%s276 + $0x18] sm:$0xff]
                %285 = vst [vmem:[%s277 + $0x18] sm:$0xff] %v284
                %v286 = vld [vmem:[%s276 + $0x20] sm:$0xff]
                %287 = vst [vmem:[%s277 + $0x40] sm:$0xff] %v286
                %v288 = vld [vmem:[%s276 + $0x28] sm:$0xff]
                %289 = vst [vmem:[%s277 + $0x48] sm:$0xff] %v288
                %v290 = vld [vmem:[%s276 + $0x30] sm:$0xff]
                %291 = vst [vmem:[%s277 + $0x50] sm:$0xff] %v290
                %v292 = vld [vmem:[%s276 + $0x38] sm:$0xff]
                %293 = vst [vmem:[%s277 + $0x58] sm:$0xff] %v292
              $region68: #{se_block.1} parent=62 // loop_footer
                %s275 = sadd.s32 1, %s271
              $region69: #{se_block.1} parent=62 // loop_footer_branch
                %270 = sbr.rel target = $region65
              $region70: #{se_block.1} parent=62 // loop_exit
                _
            $region63: #{se_block.1} parent=58 // pred_fallthru
              _
            // Predicated region
            $region71: #{se_block.1} parent=58 // pred_check
              _
            $region72: #{se_block.1} parent=58 // pred_check_branch
              %295 = sbr.rel target = $region74
            $region73: #{se_block.1} parent=58 // pred_region
              _
            $region74: #{se_block.1} parent=58 // pred_fallthru
              _
          $region59: #{se_block.1} parent=54 // pred_fallthru
            _
          %296 = vnop
        $region55: #{se_block.1} parent=46 // pred_fallthru
          _
      $region47: #{se_block.1} parent=5 // pred_fallthru
        _
      %p297 = scmp.le.s32.totalorder 2, %s8
      // Predicated region
      $region75: #{se_block.1} parent=5 // pred_check
        %p298 = pneg %p297
      $region76: #{se_block.1} parent=5 // pred_check_branch
        %300 = sbr.rel (%p298) target = $region78
      $region77: #{se_block.1} parent=5 // pred_region
        %s301 = ssub.s32 %s8, 2
        // Predicated region
        $region79: #{se_block.1} parent=77 // pred_check
          %p302 = pneg %p105
        $region80: #{se_block.1} parent=77 // pred_check_branch
          %304 = sbr.rel (%p302) target = $region82
        $region81: #{se_block.1} parent=77 // pred_region
          %s305 = sand.u32 %s90, 1
          %s306 = sand.u32 %s90, 1
          %s307 = smul.addr %s306, 64
          %s308 = scalar_lea.vmem [#allocation3], %s307
        $region82: #{se_block.1} parent=77 // pred_fallthru
          _
      $region78: #{se_block.1} parent=5 // pred_fallthru
        _
    $region6: #{se_block.1} parent=1 // loop_footer
      %s12 = sadd.s32 1, %s8
    $region7: #{se_block.1} parent=1 // loop_footer_branch
      %7 = sbr.rel target = $region3
    $region8: #{se_block.1} parent=1 // loop_exit
      _

</llo_original>
